<compile_context>
chip_gen: v6e
topology: v6e:2x2x1
jax: 0.10.0
libtpu: 0.0.40
codegen_flags: <defaults>
</compile_context>

<pallas_src>
import jax
import jax.numpy as jnp
from jax import lax
from jax.experimental import pallas as pl
from jax.experimental.pallas import tpu as pltpu

H1, H2 = 20, 10          # hidden sizes from the PyTorch module
_PALLAS_MIN_BATCH = 512  # below this, a single fused XLA dispatch is at least as fast


def dqn_kernel(x_ref, w1_ref, b1_ref, w2_ref, b2_ref, w3_ref, b3_ref, o_ref):
    # x_ref: [TB, in] (batch-major tile); w*: [out, in]; b*: [out, 1]; o_ref: [out, TB]
    x = x_ref[...]
    # W @ x^T via dot_general (contract the feature axes) -> feature-major [H1, TB];
    # the x relayout happens in VMEM, not as an extra HBM pass in the wrapper.
    contract = (((1,), (1,)), ((), ()))
    h1 = jnp.tanh(
        lax.dot_general(w1_ref[...], x, contract, preferred_element_type=jnp.float32)
        + b1_ref[...]
    )  # [H1, TB]
    h2 = jnp.maximum(
        jnp.dot(w2_ref[...], h1, preferred_element_type=jnp.float32) + b2_ref[...],
        0.0,
    )  # [H2, TB]
    o_ref[...] = (
        jnp.dot(w3_ref[...], h2, preferred_element_type=jnp.float32) + b3_ref[...]
    ).astype(o_ref.dtype)  # [out, TB]


def _round_up(x, m):
    return ((x + m - 1) // m) * m


def _pick_tile(B, max_tile):
    """Lane-dense batch tile.

    * tiny batches: one block equal to the full batch (always a legal block shape)
    * otherwise: multiple of 128, ~cdiv(B, 2) so there are >=2 grid steps
      (v7x megacore can shard the 'parallel' batch axis), capped at max_tile
      to bound VMEM and keep many steps for very large batches.
    """
    if B <= 256:
        return int(B)
    tb = _round_up(pl.cdiv(B, 2), 128)
    return int(min(max_tile, tb))


def dqn_forward_feature_major(x, params, *, max_tile=8192):
    """x: [B, in] f32. Returns FEATURE-MAJOR output [out, B] (copy-free path)."""
    w1, b1, w2, b2, w3, b3 = params
    B, in_dim = x.shape
    out_dim = w3.shape[0]

    TB = _pick_tile(B, max_tile)
    grid = (pl.cdiv(B, TB),)

    batch_in = lambda i: (i, 0)   # stream x tiles along the batch axis
    batch_out = lambda i: (0, i)  # lane-dense feature-major output tiles
    resident = lambda i: (0, 0)   # weights/biases: DMA once, stay in VMEM

    # Advisory cost (count the ragged tail we actually compute).
    cols = grid[0] * TB
    flops = 2 * cols * (in_dim * H1 + H1 * H2 + H2 * out_dim)
    bytes_accessed = cols * (in_dim + out_dim) * 4 + sum(
        int(a.size) * 4 for a in (w1, b1, w2, b2, w3, b3)
    )
    cost = pl.CostEstimate(
        flops=flops, transcendentals=cols * H1, bytes_accessed=bytes_accessed
    )

    # Batch-major x tile pads its narrow lane dim in VMEM (~512 B/col double-buffered);
    # budget generously but never above v7x's 64 MiB physical VMEM.
    vmem_limit = int(min(64 << 20, max(32 << 20, 1600 * TB + (4 << 20))))

    out_fm = pl.pallas_call(
        dqn_kernel,
        out_shape=jax.ShapeDtypeStruct((out_dim, B), jnp.float32),
        grid=grid,
        in_specs=[
            pl.BlockSpec((TB, in_dim), batch_in),       # x tile (double-buffered)
            pl.BlockSpec((H1, in_dim), resident),       # w1
            pl.BlockSpec((H1, 1), resident),            # b1
            pl.BlockSpec((H2, H1), resident),           # w2
            pl.BlockSpec((H2, 1), resident),            # b2
            pl.BlockSpec((out_dim, H2), resident),      # w3
            pl.BlockSpec((out_dim, 1), resident),       # b3
        ],
        out_specs=pl.BlockSpec((out_dim, TB), batch_out),
        compiler_params=pltpu.CompilerParams(
            dimension_semantics=("parallel",),          # megacore-shard batch on v7x
            vmem_limit_bytes=vmem_limit,
        ),
        cost_estimate=cost,
    )(x, w1, b1.reshape(-1, 1), w2, b2.reshape(-1, 1), w3, b3.reshape(-1, 1))

    return out_fm  # [out, B]


def dqn_forward(x, params, *, max_tile=8192, use_pallas=None):
    """PyTorch-layout forward: x [B, in] -> [B, out]."""
    B = x.shape[0]
    if use_pallas is None:
        use_pallas = B >= _PALLAS_MIN_BATCH
    if not use_pallas:
        # Tiny batches are pure launch overhead in a kernel; let XLA fuse it.
        return dqn_reference(x, params)
    return dqn_forward_feature_major(x, params, max_tile=max_tile).T


def init_dqn_params(key, inputs, outputs):
    """nn.Linear-style params: W [out, in], b [out], init U(-1/sqrt(fan_in), 1/sqrt(fan_in))."""
    dims = [(inputs, H1), (H1, H2), (H2, outputs)]
    params = []
    for i, (fan_in, fan_out) in enumerate(dims):
        kw, kb = jax.random.split(jax.random.fold_in(key, i))
        bound = 1.0 / jnp.sqrt(float(fan_in))
        w = jax.random.uniform(kw, (fan_out, fan_in), jnp.float32, -bound, bound)
        b = jax.random.uniform(kb, (fan_out,), jnp.float32, -bound, bound)
        params.extend([w, b])
    return tuple(params)


def dqn_reference(x, params):
    w1, b1, w2, b2, w3, b3 = params
    h1 = jnp.tanh(x @ w1.T + b1)
    h2 = jax.nn.relu(h1 @ w2.T + b2)
    return h2 @ w3.T + b3


if __name__ == "__main__":
    key = jax.random.PRNGKey(0)
    inputs, outputs = 4, 2
    kx, kp = jax.random.split(key)
    params = init_dqn_params(kp, inputs, outputs)

    # Small shape: single full-batch block, forced through the Pallas path.
    x_small = jax.random.normal(kx, (8, inputs), dtype=jnp.float32)
    out_small = jax.block_until_ready(dqn_forward(x_small, params, use_pallas=True))
    ref_small = dqn_reference(x_small, params)
    assert out_small.shape == (8, outputs)
    assert jnp.allclose(out_small, ref_small, atol=1e-5, rtol=1e-5)

    # Non-divisible batch: 2-step grid (megacore-shardable), ragged masked last
    # block, resident weights across steps, no wrapper-side x transpose/pad.
    x_big = jax.random.normal(jax.random.fold_in(kx, 1), (600, inputs), jnp.float32)
    out_big = jax.block_until_ready(dqn_forward(x_big, params))
    ref_big = dqn_reference(x_big, params)
    assert out_big.shape == (600, outputs)
    assert jnp.allclose(out_big, ref_big, atol=1e-5, rtol=1e-5)

    # Feature-major (copy-free) API also works and matches.
    out_fm = jax.block_until_ready(dqn_forward_feature_major(x_big, params))
    assert out_fm.shape == (outputs, 600)
    assert jnp.allclose(out_fm.T, ref_big, atol=1e-5, rtol=1e-5)

    print("KERNEL_OK")
</pallas_src>

<mosaic_0001>
module attributes {stable_mosaic.version = 11 : i64} {
  func.func @dqn_kernel(%arg0: i32, %arg1: memref<8x4xf32, #tpu.memory_space<vmem>>, %arg2: memref<20x4xf32, #tpu.memory_space<vmem>>, %arg3: memref<20x1xf32, #tpu.memory_space<vmem>>, %arg4: memref<10x20xf32, #tpu.memory_space<vmem>>, %arg5: memref<10x1xf32, #tpu.memory_space<vmem>>, %arg6: memref<2x10xf32, #tpu.memory_space<vmem>>, %arg7: memref<2x1xf32, #tpu.memory_space<vmem>>, %arg8: memref<2x8xf32, #tpu.memory_space<vmem>>) attributes {dimension_semantics = [#tpu.dimension_semantics<parallel>], iteration_bounds = array<i64: 1>, scalar_prefetch = 0 : i64, scratch_operands = 0 : i64, tpu.core_type = #tpu.core_type<tc>, window_params = [{transform_indices = @transform_0, window_bounds = array<i64: 8, 4>}, {pipeline_mode = #tpu.pipeline_mode<synchronous>, transform_indices = @transform_1, window_bounds = array<i64: 20, 4>}, {pipeline_mode = #tpu.pipeline_mode<synchronous>, transform_indices = @transform_2, window_bounds = array<i64: 20, 1>}, {pipeline_mode = #tpu.pipeline_mode<synchronous>, transform_indices = @transform_3, window_bounds = array<i64: 10, 20>}, {pipeline_mode = #tpu.pipeline_mode<synchronous>, transform_indices = @transform_4, window_bounds = array<i64: 10, 1>}, {pipeline_mode = #tpu.pipeline_mode<synchronous>, transform_indices = @transform_5, window_bounds = array<i64: 2, 10>}, {pipeline_mode = #tpu.pipeline_mode<synchronous>, transform_indices = @transform_6, window_bounds = array<i64: 2, 1>}, {transform_indices = @transform_7, window_bounds = array<i64: 2, 8>}]} {
    %c0 = arith.constant 0 : index
    %c0_0 = arith.constant 0 : index
    %0 = vector.load %arg1[%c0, %c0_0] : memref<8x4xf32, #tpu.memory_space<vmem>>, vector<8x4xf32>
    %c0_1 = arith.constant 0 : index
    %c0_2 = arith.constant 0 : index
    %1 = vector.load %arg2[%c0_1, %c0_2] : memref<20x4xf32, #tpu.memory_space<vmem>>, vector<20x4xf32>
    %cst = arith.constant dense<0.000000e+00> : vector<20x8xf32>
    %2 = tpu.matmul %1, %0, %cst {dimension_numbers = #tpu.dot_dimension_numbers<[1], [1], [0], [0], [0, 0, 1, 0], [], []>} : vector<20x4xf32>, vector<8x4xf32>, vector<20x8xf32> -> vector<20x8xf32>
    %c0_3 = arith.constant 0 : index
    %c0_4 = arith.constant 0 : index
    %3 = vector.load %arg3[%c0_3, %c0_4] : memref<20x1xf32, #tpu.memory_space<vmem>>, vector<20x1xf32>
    %4 = vector.broadcast %3 : vector<20x1xf32> to vector<20x8xf32>
    %5 = arith.addf %2, %4 : vector<20x8xf32>
    %6 = math.tanh %5 : vector<20x8xf32>
    %c0_5 = arith.constant 0 : index
    %c0_6 = arith.constant 0 : index
    %7 = vector.load %arg4[%c0_5, %c0_6] : memref<10x20xf32, #tpu.memory_space<vmem>>, vector<10x20xf32>
    %cst_7 = arith.constant dense<0.000000e+00> : vector<10x8xf32>
    %8 = tpu.matmul %7, %6, %cst_7 {dimension_numbers = #tpu.dot_dimension_numbers<[1], [0], [0], [1], [0, 0, 1, 1], [], []>} : vector<10x20xf32>, vector<20x8xf32>, vector<10x8xf32> -> vector<10x8xf32>
    %c0_8 = arith.constant 0 : index
    %c0_9 = arith.constant 0 : index
    %9 = vector.load %arg5[%c0_8, %c0_9] : memref<10x1xf32, #tpu.memory_space<vmem>>, vector<10x1xf32>
    %10 = vector.broadcast %9 : vector<10x1xf32> to vector<10x8xf32>
    %11 = arith.addf %8, %10 : vector<10x8xf32>
    %cst_10 = arith.constant 0.000000e+00 : f32
    %12 = vector.broadcast %cst_10 : f32 to vector<10x8xf32>
    %13 = arith.maximumf %11, %12 : vector<10x8xf32>
    %c0_11 = arith.constant 0 : index
    %c0_12 = arith.constant 0 : index
    %14 = vector.load %arg6[%c0_11, %c0_12] : memref<2x10xf32, #tpu.memory_space<vmem>>, vector<2x10xf32>
    %cst_13 = arith.constant dense<0.000000e+00> : vector<2x8xf32>
    %15 = tpu.matmul %14, %13, %cst_13 {dimension_numbers = #tpu.dot_dimension_numbers<[1], [0], [0], [1], [0, 0, 1, 1], [], []>} : vector<2x10xf32>, vector<10x8xf32>, vector<2x8xf32> -> vector<2x8xf32>
    %c0_14 = arith.constant 0 : index
    %c0_15 = arith.constant 0 : index
    %16 = vector.load %arg7[%c0_14, %c0_15] : memref<2x1xf32, #tpu.memory_space<vmem>>, vector<2x1xf32>
    %17 = vector.broadcast %16 : vector<2x1xf32> to vector<2x8xf32>
    %18 = arith.addf %15, %17 : vector<2x8xf32>
    %c0_16 = arith.constant 0 : index
    %c0_17 = arith.constant 0 : index
    %19 = vector.load %arg8[%c0_16, %c0_17] : memref<2x8xf32, #tpu.memory_space<vmem>>, vector<2x8xf32>
    tpu.vector_store %arg8[%c0_16, %c0_17], %18 {strides = array<i32>} : memref<2x8xf32, #tpu.memory_space<vmem>>, vector<2x8xf32>,
    return
  }
  func.func @transform_0(%arg0: i32) -> (i32, i32) {
    %c0_i32 = arith.constant 0 : i32
    %c0_i32_0 = arith.constant 0 : i32
    return %arg0, %c0_i32 : i32, i32
  }
  func.func @transform_1(%arg0: i32) -> (i32, i32) {
    %c0_i32 = arith.constant 0 : i32
    %c0_i32_0 = arith.constant 0 : i32
    %c0_i32_1 = arith.constant 0 : i32
    return %c0_i32, %c0_i32_0 : i32, i32
  }
  func.func @transform_2(%arg0: i32) -> (i32, i32) {
    %c0_i32 = arith.constant 0 : i32
    %c0_i32_0 = arith.constant 0 : i32
    %c0_i32_1 = arith.constant 0 : i32
    return %c0_i32, %c0_i32_0 : i32, i32
  }
  func.func @transform_3(%arg0: i32) -> (i32, i32) {
    %c0_i32 = arith.constant 0 : i32
    %c0_i32_0 = arith.constant 0 : i32
    %c0_i32_1 = arith.constant 0 : i32
    return %c0_i32, %c0_i32_0 : i32, i32
  }
  func.func @transform_4(%arg0: i32) -> (i32, i32) {
    %c0_i32 = arith.constant 0 : i32
    %c0_i32_0 = arith.constant 0 : i32
    %c0_i32_1 = arith.constant 0 : i32
    return %c0_i32, %c0_i32_0 : i32, i32
  }
  func.func @transform_5(%arg0: i32) -> (i32, i32) {
    %c0_i32 = arith.constant 0 : i32
    %c0_i32_0 = arith.constant 0 : i32
    %c0_i32_1 = arith.constant 0 : i32
    return %c0_i32, %c0_i32_0 : i32, i32
  }
  func.func @transform_6(%arg0: i32) -> (i32, i32) {
    %c0_i32 = arith.constant 0 : i32
    %c0_i32_0 = arith.constant 0 : i32
    %c0_i32_1 = arith.constant 0 : i32
    return %c0_i32, %c0_i32_0 : i32, i32
  }
  func.func @transform_7(%arg0: i32) -> (i32, i32) {
    %c0_i32 = arith.constant 0 : i32
    %c0_i32_0 = arith.constant 0 : i32
    return %c0_i32, %arg0 : i32, i32
  }
}

</mosaic_0001>

<llo_original>
// kernel: tpu_custom_call.1
$region0: #{tpu_custom_call.1}
  #allocation0 [shape = 'u32[]', space=smem, size = 0x4, offset = 0x4, fixed_abs, tag = 'smem constant byte address 0x4 - core index']
  #allocation1 [shape = 'u32[144,128]{1,0:T(1,128)}', space=vmem, size = 0x12000, scoped, tag = 'internal scratch']
  %s0 = inlined_call_operand.vmem [shape: f32[8,4], index: 0, kind: input, shape index: {}]
  %s1 = inlined_call_operand.vmem [shape: f32[20,4], index: 1, kind: input, shape index: {}]
  %s2 = inlined_call_operand.vmem [shape: f32[20,1], index: 2, kind: input, shape index: {}]
  %s3 = inlined_call_operand.vmem [shape: f32[10,20], index: 3, kind: input, shape index: {}]
  %s4 = inlined_call_operand.vmem [shape: f32[10,1], index: 4, kind: input, shape index: {}]
  %s5 = inlined_call_operand.vmem [shape: f32[2,10], index: 5, kind: input, shape index: {}]
  %s6 = inlined_call_operand.vmem [shape: f32[2,1], index: 6, kind: input, shape index: {}]
  %s7 = inlined_call_operand.hbm [shape: f32[2,8], index: 7, kind: output, shape index: {}]
  %s8 = sld [smem:[#allocation0]]
  $region38: #{tpu_custom_call.1} parent=0
    _
  %s10 = ssub.s32 1, %s8
  %s11 = scalar_select 0, %s10, %s8
  $region1: #{tpu_custom_call.1} parent=0
    #allocation2 [shape = 'u8[1024]{0}', space=vmem, size = 0x400, scoped, tag = 'output window, operand 0, single buffered']
    #allocation3 [shape = 's32[1]{0}', space=sflag, size = 0x4, scoped, tag = 'scoped memory for tpu_custom_call.1']
    %12 = vsyncpa [#allocation3], 0
    // Predicated region
    $region2: #{tpu_custom_call.1} parent=1 // pred_check
      _
    $region3: #{tpu_custom_call.1} parent=1 // pred_check_branch
      %14 = sbr.rel (0) target = $region5
    $region4: #{tpu_custom_call.1} parent=1 // pred_region
      _
    $region5: #{tpu_custom_call.1} parent=1 // pred_fallthru
      _
    // Predicated region
    $region6: #{tpu_custom_call.1} parent=1 // pred_check
      _
    $region7: #{tpu_custom_call.1} parent=1 // pred_check_branch
      %16 = sbr.rel (0) target = $region9
    $region8: #{tpu_custom_call.1} parent=1 // pred_region
      _
    $region9: #{tpu_custom_call.1} parent=1 // pred_fallthru
      _
    // Predicated region
    $region10: #{tpu_custom_call.1} parent=1 // pred_check
      _
    $region11: #{tpu_custom_call.1} parent=1 // pred_check_branch
      %18 = sbr.rel (0) target = $region13
    $region12: #{tpu_custom_call.1} parent=1 // pred_region
      _
    $region13: #{tpu_custom_call.1} parent=1 // pred_fallthru
      _
    // Predicated region
    $region14: #{tpu_custom_call.1} parent=1 // pred_check
      _
    $region15: #{tpu_custom_call.1} parent=1 // pred_check_branch
      %20 = sbr.rel (0) target = $region17
    $region16: #{tpu_custom_call.1} parent=1 // pred_region
      _
    $region17: #{tpu_custom_call.1} parent=1 // pred_fallthru
      _
    // Predicated region
    $region18: #{tpu_custom_call.1} parent=1 // pred_check
      _
    $region19: #{tpu_custom_call.1} parent=1 // pred_check_branch
      %22 = sbr.rel (0) target = $region21
    $region20: #{tpu_custom_call.1} parent=1 // pred_region
      _
    $region21: #{tpu_custom_call.1} parent=1 // pred_fallthru
      _
    // Predicated region
    $region22: #{tpu_custom_call.1} parent=1 // pred_check
      _
    $region23: #{tpu_custom_call.1} parent=1 // pred_check_branch
      %24 = sbr.rel (0) target = $region25
    $region24: #{tpu_custom_call.1} parent=1 // pred_region
      _
    $region25: #{tpu_custom_call.1} parent=1 // pred_fallthru
      _
    // Predicated region
    $region26: #{tpu_custom_call.1} parent=1 // pred_check
      _
    $region27: #{tpu_custom_call.1} parent=1 // pred_check_branch
      %26 = sbr.rel (0) target = $region29
    $region28: #{tpu_custom_call.1} parent=1 // pred_region
      _
    $region29: #{tpu_custom_call.1} parent=1 // pred_fallthru
      _
    %v27 = vld [vmem:[%s0] sm:$0xff]
    %v28 = vld [vmem:[%s1] sm:$0xff]
    %v29 = vld [vmem:[%s1 + $0x8] sm:$0xff]
    %v30 = vld [vmem:[%s1 + $0x10] sm:$0xf]
    %v31 = vld [vmem:[%s2] sm:$0xff]
    %v32 = vld [vmem:[%s2 + $0x8] sm:$0xff]
    %v33 = vld [vmem:[%s2 + $0x10] sm:$0xf]
    %35 = vset.pattern.permute.xlu0 0
    %36 = vperm.xlu0 %35, %v31
    %v37 = vpop.permute.xlu0 %36
    %40 = vset.pattern.permute.xlu0 0
    %41 = vperm.xlu0 %40, %v32
    %v42 = vpop.permute.xlu0 %41
    %45 = vset.pattern.permute.xlu0 0
    %46 = vperm.xlu0 %45, %v33
    %v47 = vpop.permute.xlu0 %46
    %vm49 = vcmask 31744
    %v51 = vsel %vm49, %v28, 0
    %v54 = vsel %vm49, %v29, 0
    %v57 = vsel %vm49, %v30, 0
    %v60 = vsel %vm49, %v27, 0
    %62 = vmatprep.subr.mxu0 0.0
    %63 = vmatpush1.xpose.msra.mxu0 0.0
    %64 = vmatprep.subr.mxu0 0.0
    %65 = vmatpush1.xpose.msra.mxu0 0.0
    %66 = vmatprep.subr.mxu0 0.0
    %67 = vmatpush1.xpose.msra.mxu0 0.0
    %68 = vmatprep.subr.mxu0 0.0
    %69 = vmatpush1.xpose.msra.mxu0 0.0
    %70 = vmatprep.subr.mxu0 0.0
    %71 = vmatpush1.xpose.msra.mxu0 0.0
    %72 = vmatprep.subr.mxu0 0.0
    %73 = vmatpush1.xpose.msra.mxu0 0.0
    %74 = vmatprep.subr.mxu0 0.0
    %75 = vmatpush1.xpose.msra.mxu0 0.0
    %76 = vmatprep.subr.mxu0 0.0
    %77 = vmatpush1.xpose.msra.mxu0 0.0
    %78 = vmatprep.subr.mxu0 0.0
    %79 = vmatpush1.xpose.msra.mxu0 0.0
    %80 = vmatprep.subr.mxu0 0.0
    %81 = vmatpush1.xpose.msra.mxu0 0.0
    %82 = vmatprep.subr.mxu0 0.0
    %83 = vmatpush1.xpose.msra.mxu0 0.0
    %84 = vmatprep.subr.mxu0 0.0
    %85 = vmatpush1.xpose.msra.mxu0 0.0
    %86 = vmatprep.subr.mxu0 0.0
    %87 = vmatpush1.xpose.msra.mxu0 0.0
    %88 = vmatprep.subr.mxu0 0.0
    %89 = vmatpush1.xpose.msra.mxu0 0.0
    %90 = vmatprep.subr.mxu0 0.0
    %91 = vmatpush1.xpose.msra.mxu0 0.0
    %92 = vmatprep.subr.mxu0 0.0
    %93 = vmatpush1.xpose.msra.mxu0 %v60
    %94 = vmatprep.subr.mxu0 0.0
    %95 = vmatpush2.xpose.msra.mxu0 0.0
    %96 = vmatprep.subr.mxu0 0.0
    %97 = vmatpush2.xpose.msra.mxu0 0.0
    %98 = vmatprep.subr.mxu0 0.0
    %99 = vmatpush2.xpose.msra.mxu0 0.0
    %100 = vmatprep.subr.mxu0 0.0
    %101 = vmatpush2.xpose.msra.mxu0 0.0
    %102 = vmatprep.subr.mxu0 0.0
    %103 = vmatpush2.xpose.msra.mxu0 0.0
    %104 = vmatprep.subr.mxu0 0.0
    %105 = vmatpush2.xpose.msra.mxu0 0.0
    %106 = vmatprep.subr.mxu0 0.0
    %107 = vmatpush2.xpose.msra.mxu0 0.0
    %108 = vmatprep.subr.mxu0 0.0
    %109 = vmatpush2.xpose.msra.mxu0 0.0
    %110 = vmatprep.subr.mxu0 0.0
    %111 = vmatpush2.xpose.msra.mxu0 0.0
    %112 = vmatprep.subr.mxu0 0.0
    %113 = vmatpush2.xpose.msra.mxu0 0.0
    %114 = vmatprep.subr.mxu0 0.0
    %115 = vmatpush2.xpose.msra.mxu0 0.0
    %116 = vmatprep.subr.mxu0 0.0
    %117 = vmatpush2.xpose.msra.mxu0 0.0
    %118 = vmatprep.subr.mxu0 0.0
    %119 = vmatpush2.xpose.msra.mxu0 0.0
    %120 = vmatprep.subr.mxu0 0.0
    %121 = vmatpush2.xpose.msra.mxu0 0.0
    %122 = vmatprep.subr.mxu0 0.0
    %123 = vmatpush2.xpose.msra.mxu0 0.0
    %124 = vmatprep.subr.mxu0 0.0
    %125 = vmatpush2.xpose.msra.mxu0 0.0
    %126 = vmatprep.mubr.f32.mxu0 0.0
    %127 = vmatmul.mubr.f32.gmra.mxu0 %v51
    %v128 = vpop.f32.mrf.mxu0
    %v129 = vadd.f32 %v37, %v128
    %v130 = vpop.f32.mrf.mxu0
    %131 = vmatprep.mubr.f32.mxu0 0.0
    %132 = vmatmul.mubr.f32.gmra.mxu0 %v54
    %v133 = vpop.f32.mrf.mxu0
    %v134 = vadd.f32 %v42, %v133
    %v135 = vpop.f32.mrf.mxu0
    %136 = vmatprep.mubr.f32.mxu0 0.0
    %137 = vmatmul.mubr.f32.gmra.mxu0 %v57
    %v138 = vpop.f32.mrf.mxu0
    %v139 = vadd.f32 %v47, %v138
    %v140 = vpop.f32.mrf.mxu0
    %141 = vdwg.mxu0
    %v142 = vtanh.pop %v129
    %v143 = vtanh.pop %v134
    %v144 = vtanh.pop %v139
    %v145 = vld [vmem:[%s3] sm:$0xff]
    %v146 = vld [vmem:[%s3 + $0x8] sm:$0x3]
    %v147 = vld [vmem:[%s4] sm:$0xff]
    %v148 = vld [vmem:[%s4 + $0x8] sm:$0x3]
    %150 = vset.pattern.permute.xlu0 0
    %151 = vperm.xlu0 %150, %v147
    %v152 = vpop.permute.xlu0 %151
    %155 = vset.pattern.permute.xlu0 0
    %156 = vperm.xlu0 %155, %v148
    %v157 = vpop.permute.xlu0 %156
    %vm159 = vcmask 162816
    %v161 = vsel %vm159, %v145, 0
    %v164 = vsel %vm159, %v146, 0
    %vm166 = vcmask 1043456
    %v168 = vsel %vm166, %v144, 0
    %170 = vmatprep.subr.mxu0 0.0
    %171 = vmatpush1.msra.mxu0 0.0
    %172 = vmatprep.subr.mxu0 0.0
    %173 = vmatpush1.msra.mxu0 0.0
    %174 = vmatprep.subr.mxu0 0.0
    %175 = vmatpush1.msra.mxu0 0.0
    %176 = vmatprep.subr.mxu0 0.0
    %177 = vmatpush1.msra.mxu0 0.0
    %178 = vmatprep.subr.mxu0 0.0
    %179 = vmatpush1.msra.mxu0 0.0
    %180 = vmatprep.subr.mxu0 0.0
    %181 = vmatpush1.msra.mxu0 0.0
    %182 = vmatprep.subr.mxu0 0.0
    %183 = vmatpush1.msra.mxu0 0.0
    %184 = vmatprep.subr.mxu0 0.0
    %185 = vmatpush1.msra.mxu0 0.0
    %186 = vmatprep.subr.mxu0 0.0
    %187 = vmatpush1.msra.mxu0 0.0
    %188 = vmatprep.subr.mxu0 0.0
    %189 = vmatpush1.msra.mxu0 0.0
    %190 = vmatprep.subr.mxu0 0.0
    %191 = vmatpush1.msra.mxu0 0.0
    %192 = vmatprep.subr.mxu0 0.0
    %193 = vmatpush1.msra.mxu0 0.0
    %194 = vmatprep.subr.mxu0 0.0
    %195 = vmatpush1.msra.mxu0 0.0
    %196 = vmatprep.subr.mxu0 0.0
    %197 = vmatpush1.msra.mxu0 %v168
    %198 = vmatprep.subr.mxu0 0.0
    %199 = vmatpush1.msra.mxu0 %v143
    %200 = vmatprep.subr.mxu0 0.0
    %201 = vmatpush1.msra.mxu0 %v142
    %202 = vmatprep.subr.mxu0 0.0
    %203 = vmatpush2.msra.mxu0 0.0
    %204 = vmatprep.subr.mxu0 0.0
    %205 = vmatpush2.msra.mxu0 0.0
    %206 = vmatprep.subr.mxu0 0.0
    %207 = vmatpush2.msra.mxu0 0.0
    %208 = vmatprep.subr.mxu0 0.0
    %209 = vmatpush2.msra.mxu0 0.0
    %210 = vmatprep.subr.mxu0 0.0
    %211 = vmatpush2.msra.mxu0 0.0
    %212 = vmatprep.subr.mxu0 0.0
    %213 = vmatpush2.msra.mxu0 0.0
    %214 = vmatprep.subr.mxu0 0.0
    %215 = vmatpush2.msra.mxu0 0.0
    %216 = vmatprep.subr.mxu0 0.0
    %217 = vmatpush2.msra.mxu0 0.0
    %218 = vmatprep.subr.mxu0 0.0
    %219 = vmatpush2.msra.mxu0 0.0
    %220 = vmatprep.subr.mxu0 0.0
    %221 = vmatpush2.msra.mxu0 0.0
    %222 = vmatprep.subr.mxu0 0.0
    %223 = vmatpush2.msra.mxu0 0.0
    %224 = vmatprep.subr.mxu0 0.0
    %225 = vmatpush2.msra.mxu0 0.0
    %226 = vmatprep.subr.mxu0 0.0
    %227 = vmatpush2.msra.mxu0 0.0
    %228 = vmatprep.subr.mxu0 0.0
    %229 = vmatpush2.msra.mxu0 0.0
    %230 = vmatprep.subr.mxu0 0.0
    %231 = vmatpush2.msra.mxu0 0.0
    %232 = vmatprep.subr.mxu0 0.0
    %233 = vmatpush2.msra.mxu0 0.0
    %234 = vmatprep.mubr.f32.mxu0 0.0
    %235 = vmatmul.mubr.f32.gmra.mxu0 %v161
    %v236 = vpop.f32.mrf.mxu0
    %v237 = vadd.f32 %v152, %v236
    %v238 = vpop.f32.mrf.mxu0
    %239 = vmatprep.mubr.f32.mxu0 0.0
    %240 = vmatmul.mubr.f32.gmra.mxu0 %v164
    %v241 = vpop.f32.mrf.mxu0
    %v242 = vadd.f32 %v157, %v241
    %v243 = vpop.f32.mrf.mxu0
    %244 = vdwg.mxu0
    %v245 = vmax.f32 %v237, 0.0
    %v246 = vmax.f32 %v242, 0.0
    %v247 = vld [vmem:[%s5] sm:$0x3]
    %v248 = vld [vmem:[%s6] sm:$0x3]
    %250 = vset.pattern.permute.xlu0 0
    %251 = vperm.xlu0 %250, %v248
    %v252 = vpop.permute.xlu0 %251
    %vm254 = vcmask 80896
    %v256 = vsel %vm254, %v247, 0
    %vm258 = vcmask 1041408
    %v260 = vsel %vm258, %v246, 0
    %262 = vmatprep.subr.mxu0 0.0
    %263 = vmatpush1.msra.mxu0 0.0
    %264 = vmatprep.subr.mxu0 0.0
    %265 = vmatpush1.msra.mxu0 0.0
    %266 = vmatprep.subr.mxu0 0.0
    %267 = vmatpush1.msra.mxu0 0.0
    %268 = vmatprep.subr.mxu0 0.0
    %269 = vmatpush1.msra.mxu0 0.0
    %270 = vmatprep.subr.mxu0 0.0
    %271 = vmatpush1.msra.mxu0 0.0
    %272 = vmatprep.subr.mxu0 0.0
    %273 = vmatpush1.msra.mxu0 0.0
    %274 = vmatprep.subr.mxu0 0.0
    %275 = vmatpush1.msra.mxu0 0.0
    %276 = vmatprep.subr.mxu0 0.0
    %277 = vmatpush1.msra.mxu0 0.0
    %278 = vmatprep.subr.mxu0 0.0
    %279 = vmatpush1.msra.mxu0 0.0
    %280 = vmatprep.subr.mxu0 0.0
    %281 = vmatpush1.msra.mxu0 0.0
    %282 = vmatprep.subr.mxu0 0.0
    %283 = vmatpush1.msra.mxu0 0.0
    %284 = vmatprep.subr.mxu0 0.0
    %285 = vmatpush1.msra.mxu0 0.0
    %286 = vmatprep.subr.mxu0 0.0
    %287 = vmatpush1.msra.mxu0 0.0
    %288 = vmatprep.subr.mxu0 0.0
    %289 = vmatpush1.msra.mxu0 0.0
    %290 = vmatprep.subr.mxu0 0.0
    %291 = vmatpush1.msra.mxu0 %v260
    %292 = vmatprep.subr.mxu0 0.0
    %293 = vmatpush1.msra.mxu0 %v245
    %294 = vmatprep.subr.mxu0 0.0
    %295 = vmatpush2.msra.mxu0 0.0
    %296 = vmatprep.subr.mxu0 0.0
    %297 = vmatpush2.msra.mxu0 0.0
    %298 = vmatprep.subr.mxu0 0.0
    %299 = vmatpush2.msra.mxu0 0.0
    %300 = vmatprep.subr.mxu0 0.0
    %301 = vmatpush2.msra.mxu0 0.0
    %302 = vmatprep.subr.mxu0 0.0
    %303 = vmatpush2.msra.mxu0 0.0
    %304 = vmatprep.subr.mxu0 0.0
    %305 = vmatpush2.msra.mxu0 0.0
    %306 = vmatprep.subr.mxu0 0.0
    %307 = vmatpush2.msra.mxu0 0.0
    %308 = vmatprep.subr.mxu0 0.0
    %309 = vmatpush2.msra.mxu0 0.0
    %310 = vmatprep.subr.mxu0 0.0
    %311 = vmatpush2.msra.mxu0 0.0
    %312 = vmatprep.subr.mxu0 0.0
    %313 = vmatpush2.msra.mxu0 0.0
    %314 = vmatprep.subr.mxu0 0.0
    %315 = vmatpush2.msra.mxu0 0.0
    %316 = vmatprep.subr.mxu0 0.0
    %317 = vmatpush2.msra.mxu0 0.0
    %318 = vmatprep.subr.mxu0 0.0
    %319 = vmatpush2.msra.mxu0 0.0
    %320 = vmatprep.subr.mxu0 0.0
    %321 = vmatpush2.msra.mxu0 0.0
    %322 = vmatprep.subr.mxu0 0.0
    %323 = vmatpush2.msra.mxu0 0.0
    %324 = vmatprep.subr.mxu0 0.0
    %325 = vmatpush2.msra.mxu0 0.0
    %326 = vmatprep.mubr.f32.mxu0 0.0
    %327 = vmatmul.mubr.f32.gmra.mxu0 %v256
    %v328 = vpop.f32.mrf.mxu0
    %v329 = vadd.f32 %v252, %v328
    %v330 = vpop.f32.mrf.mxu0
    %331 = vdwg.mxu0
    %vm332 = vcmask 58368
    %333 = vst.msk [vmem:[#allocation2] sm:$0x3] %vm332, %v329
    // Predicated region
    $region30: #{tpu_custom_call.1} parent=1 // pred_check
      _
    $region31: #{tpu_custom_call.1} parent=1 // pred_check_branch
      %335 = sbr.rel (0) target = $region33
    $region32: #{tpu_custom_call.1} parent=1 // pred_region
      %s337 = ssub.s32 32, 32
      %338 = vsyncadd [#allocation3], %s337
      %s340 = sshll.u32 [#allocation2], 4
      %s341 = int_to_ptr.vmem [resolvable:$true] %s340
      %343 = dma.vmem_to_hbm [thread:$0]  %s341, 32, %s7, [#allocation3]
    $region33: #{tpu_custom_call.1} parent=1 // pred_fallthru
      _
    // Predicated region
    $region34: #{tpu_custom_call.1} parent=1 // pred_check
      _
    $region35: #{tpu_custom_call.1} parent=1 // pred_check_branch
      %345 = sbr.rel (0) target = $region37
    $region36: #{tpu_custom_call.1} parent=1 // pred_region
      %346 = dma.done [#allocation3], 32
    $region37: #{tpu_custom_call.1} parent=1 // pred_fallthru
      _
    %347 = vsyncpa [#allocation3], 1

</llo_original>
